<compile_context>
chip_gen: v7x
topology: tpu7x:2x2x1
jax: 0.10.0
libtpu: 0.0.40
codegen_flags: <defaults>
</compile_context>

<pallas_src>
import jax
import jax.numpy as jnp
from jax.experimental import pallas as pl
from jax.experimental.pallas import tpu as pltpu

BN_EPS = 1e-5


def tatt1_fused_kernel(seq_ref, w1_ref, w2_ref, w_ref, b_ref, v_ref,
                       gamma_ref, beta_ref, out_ref):
    """Full forward for the whole batch in one program (everything VMEM-resident).

    seq_ref  : (B, C, N, T) f32 VMEM   -- original module layout, no wrapper permute
    w1_ref   : (C,)         f32 SMEM   -- conv1 1x1 weights (per-channel scalars)
    w2_ref   : (1, 1, N, 1) f32 VMEM   -- conv2 1x1 weights, sublane-major
    w_ref    : (N, C);  b_ref, v_ref: (T, T);  gamma_ref, beta_ref: (1, 1, T)
    out_ref  : (B, T, T) f32 VMEM
    """
    B, C, N, T = seq_ref.shape
    f32 = jnp.float32

    # conv2 (1x1 over nodes): f2[b,c,t] = sum_n w2[n] * seq[b,c,n,t].
    # Consumes the full (padded) seq once; nothing keeps it live afterwards.
    f2 = jnp.sum(seq_ref[...] * w2_ref[...], axis=2)          # (B, C, T)

    # conv1 (1x1 over c_in): channel-by-channel scalar*tile FMAs straight from
    # VMEM (keeps vreg pressure low), producing g1 in the native (N, T) layout.
    g1 = seq_ref[:, 0] * w1_ref[0]
    for c in range(1, C):
        g1 = g1 + seq_ref[:, c] * w1_ref[c]                   # (B, N, T)
    f1 = jnp.swapaxes(g1, 1, 2)                                # (B, T, N) XLU xpose

    # m1 = f1 @ w with the batch flattened into M: one (B*T, N) x (N, C) MXU dot.
    m1 = jnp.dot(f1.reshape(B * T, N), w_ref[...],
                 preferred_element_type=f32).reshape(B, T, C)  # (B, T, C)

    # m2[b,t,s] = sum_c m1[b,t,c] * f2[b,c,s]: K = C = 4, so skip the padded MXU
    # pass and use 4 VPU outer-product fused multiply-adds over (B, T, T) tiles.
    acc = m1[:, :, 0:1] * f2[:, 0:1, :]
    for c in range(1, C):
        acc = acc + m1[:, :, c:c + 1] * f2[:, c:c + 1, :]      # (B, T, T)
    lg = jax.nn.sigmoid(acc + b_ref[...])                      # (B, T, T)

    # l2 = v @ lg, per-batch 2-D MXU dots on the un-broadcast v.
    l2 = jnp.stack(
        [jnp.dot(v_ref[...], lg[i], preferred_element_type=f32)
         for i in range(B)], axis=0)                           # (B, T, T)

    # BatchNorm1d(T) on l2.permute(0,2,1) then permute back == normalize each
    # last-dim channel with stats over axes (0, 1); train mode: batch stats,
    # biased variance, eps=1e-5, affine gamma/beta. Single-pass fused stats.
    # TODO(synk): eval-mode BN (running_mean/var) not modeled; train-mode stats.
    inv_cnt = 1.0 / (B * T)
    mean = jnp.sum(l2, axis=(0, 1), keepdims=True) * inv_cnt   # (1, 1, T)
    ex2 = jnp.sum(l2 * l2, axis=(0, 1), keepdims=True) * inv_cnt
    var = ex2 - mean * mean
    xn = (l2 - mean) * jax.lax.rsqrt(var + BN_EPS)
    xn = xn * gamma_ref[...] + beta_ref[...]

    # Softmax over the last axis; exact divide (approx reciprocal reverted).
    mx = jnp.max(xn, axis=-1, keepdims=True)
    e = jnp.exp(xn - mx)
    out_ref[...] = e / jnp.sum(e, axis=-1, keepdims=True)


def tatt1_forward(seq, conv1_w, conv2_w, w, b, v, gamma, beta):
    """seq: (B, C, N, T) f32. Returns coefs: (B, T, T) f32."""
    B, C, N, T = seq.shape
    f32 = jnp.float32

    w1 = conv1_w.reshape(C).astype(f32)                        # SMEM scalars
    w2 = conv2_w.reshape(1, 1, N, 1).astype(f32)               # sublane-major
    g = gamma.reshape(1, 1, T).astype(f32)
    bt = beta.reshape(1, 1, T).astype(f32)

    vmem = pltpu.MemorySpace.VMEM
    smem = pltpu.MemorySpace.SMEM
    return pl.pallas_call(
        tatt1_fused_kernel,
        out_shape=jax.ShapeDtypeStruct((B, T, T), f32),
        in_specs=[
            pl.BlockSpec(memory_space=vmem),   # seq (whole batch, one block)
            pl.BlockSpec(memory_space=smem),   # conv1_w scalars
            pl.BlockSpec(memory_space=vmem),   # conv2_w (sublane-major)
            pl.BlockSpec(memory_space=vmem),   # w
            pl.BlockSpec(memory_space=vmem),   # b
            pl.BlockSpec(memory_space=vmem),   # v
            pl.BlockSpec(memory_space=vmem),   # gamma
            pl.BlockSpec(memory_space=vmem),   # beta
        ],
        out_specs=pl.BlockSpec(memory_space=vmem),
        # Footprint is <1 MiB; 4 MiB documents that this is safe even on v7x.
        compiler_params=pltpu.CompilerParams(vmem_limit_bytes=4 * 1024 * 1024),
    )(seq.astype(f32), w1, w2, w.astype(f32), b.astype(f32), v.astype(f32), g, bt)


def tatt1_reference(seq, conv1_w, conv2_w, w, b, v, gamma, beta):
    """Pure-JAX reference mirroring the PyTorch forward (train-mode BN)."""
    f1 = jnp.einsum('bcnt,c->btn', seq, conv1_w)        # conv1 + squeeze
    f2 = jnp.einsum('bcnt,n->bct', seq, conv2_w)        # conv2 + squeeze
    logits = jax.nn.sigmoid(jnp.matmul(jnp.matmul(f1, w), f2) + b)
    logits = jnp.matmul(v, logits)                      # (B, T, T)
    mean = jnp.mean(logits, axis=(0, 1), keepdims=True)
    var = jnp.mean((logits - mean) ** 2, axis=(0, 1), keepdims=True)
    xn = (logits - mean) / jnp.sqrt(var + BN_EPS) * gamma + beta
    return jax.nn.softmax(xn, axis=-1)


if __name__ == "__main__":
    # Small shapes consistent with the module: c_in=4, num_nodes=16, tem_size=16.
    B, C, N, T = 2, 4, 16, 16
    key = jax.random.PRNGKey(0)
    k_seq, k_c1, k_c2, k_w, k_v = jax.random.split(key, 5)

    seq = jax.random.normal(k_seq, (B, C, N, T), dtype=jnp.float32)

    # Deterministic parameter init (synthetic — shapes from __init__).
    conv1_w = jax.random.normal(k_c1, (C,), dtype=jnp.float32) * 0.5     # Conv2d(c_in,1,1x1)
    conv2_w = jax.random.normal(k_c2, (N,), dtype=jnp.float32) * 0.25    # Conv2d(num_nodes,1,1x1)
    lim_w = (6.0 / (N + C)) ** 0.5                                       # xavier_uniform
    w = jax.random.uniform(k_w, (N, C), jnp.float32, -lim_w, lim_w)
    b = jnp.zeros((T, T), jnp.float32)
    lim_v = (6.0 / (T + T)) ** 0.5                                       # xavier_uniform
    v = jax.random.uniform(k_v, (T, T), jnp.float32, -lim_v, lim_v)
    gamma = jnp.ones((T,), jnp.float32)                                  # BatchNorm1d affine
    beta = jnp.zeros((T,), jnp.float32)

    out = jax.block_until_ready(
        tatt1_forward(seq, conv1_w, conv2_w, w, b, v, gamma, beta))
    ref = jax.block_until_ready(
        tatt1_reference(seq, conv1_w, conv2_w, w, b, v, gamma, beta))

    assert out.shape == (B, T, T), out.shape
    # Exact softmax divide restored (per perf review); everything runs in f32,
    # so tolerance is tightened back from 1e-2 to 1e-3.
    err = float(jnp.max(jnp.abs(out - ref)))
    assert err < 1e-3, f"max abs err {err}"
    print("KERNEL_OK")
</pallas_src>

<mosaic_0001>
module attributes {stable_mosaic.version = 11 : i64} {
  func.func @tatt1_fused_kernel(%arg0: memref<2x4x16x16xf32, #tpu.memory_space<vmem>>, %arg1: memref<4xf32, #tpu.memory_space<smem>>, %arg2: memref<1x1x16x1xf32, #tpu.memory_space<vmem>>, %arg3: memref<16x4xf32, #tpu.memory_space<vmem>>, %arg4: memref<16x16xf32, #tpu.memory_space<vmem>>, %arg5: memref<16x16xf32, #tpu.memory_space<vmem>>, %arg6: memref<1x1x16xf32, #tpu.memory_space<vmem>>, %arg7: memref<1x1x16xf32, #tpu.memory_space<vmem>>, %arg8: memref<2x16x16xf32, #tpu.memory_space<vmem>>) attributes {dimension_semantics = [], scalar_prefetch = 0 : i64, scratch_operands = 0 : i64, tpu.core_type = #tpu.core_type<tc>} {
    %c0 = arith.constant 0 : index
    %c0_0 = arith.constant 0 : index
    %c0_1 = arith.constant 0 : index
    %c0_2 = arith.constant 0 : index
    %0 = vector.load %arg0[%c0, %c0_0, %c0_1, %c0_2] : memref<2x4x16x16xf32, #tpu.memory_space<vmem>>, vector<2x4x16x16xf32>
    %c0_3 = arith.constant 0 : index
    %c0_4 = arith.constant 0 : index
    %c0_5 = arith.constant 0 : index
    %c0_6 = arith.constant 0 : index
    %1 = vector.load %arg2[%c0_3, %c0_4, %c0_5, %c0_6] : memref<1x1x16x1xf32, #tpu.memory_space<vmem>>, vector<1x1x16x1xf32>
    %2 = vector.broadcast %1 : vector<1x1x16x1xf32> to vector<2x4x16x16xf32>
    %3 = arith.mulf %0, %2 : vector<2x4x16x16xf32>
    %cst = arith.constant dense<0.000000e+00> : vector<2x4x16xf32>
    %4 = vector.multi_reduction <add>, %3, %cst [2] : vector<2x4x16x16xf32> to vector<2x4x16xf32>
    %c0_7 = arith.constant 0 : index
    %c0_8 = arith.constant 0 : index
    %c0_9 = arith.constant 0 : index
    %c0_10 = arith.constant 0 : index
    %5 = vector.load %arg0[%c0_7, %c0_8, %c0_9, %c0_10] : memref<2x4x16x16xf32, #tpu.memory_space<vmem>>, vector<2x1x16x16xf32>
    %6 = vector.shape_cast %5 : vector<2x1x16x16xf32> to vector<2x16x16xf32>
    %c0_11 = arith.constant 0 : index
    %7 = memref.load %arg1[%c0_11] : memref<4xf32, #tpu.memory_space<smem>>
    %8 = vector.broadcast %7 : f32 to vector<2x16x16xf32>
    %9 = arith.mulf %6, %8 : vector<2x16x16xf32>
    %c0_12 = arith.constant 0 : index
    %c1 = arith.constant 1 : index
    %c0_13 = arith.constant 0 : index
    %c0_14 = arith.constant 0 : index
    %10 = vector.load %arg0[%c0_12, %c1, %c0_13, %c0_14] : memref<2x4x16x16xf32, #tpu.memory_space<vmem>>, vector<2x1x16x16xf32>
    %11 = vector.shape_cast %10 : vector<2x1x16x16xf32> to vector<2x16x16xf32>
    %c1_15 = arith.constant 1 : index
    %12 = memref.load %arg1[%c1_15] : memref<4xf32, #tpu.memory_space<smem>>
    %13 = vector.broadcast %12 : f32 to vector<2x16x16xf32>
    %14 = arith.mulf %11, %13 : vector<2x16x16xf32>
    %15 = arith.addf %9, %14 : vector<2x16x16xf32>
    %c0_16 = arith.constant 0 : index
    %c2 = arith.constant 2 : index
    %c0_17 = arith.constant 0 : index
    %c0_18 = arith.constant 0 : index
    %16 = vector.load %arg0[%c0_16, %c2, %c0_17, %c0_18] : memref<2x4x16x16xf32, #tpu.memory_space<vmem>>, vector<2x1x16x16xf32>
    %17 = vector.shape_cast %16 : vector<2x1x16x16xf32> to vector<2x16x16xf32>
    %c2_19 = arith.constant 2 : index
    %18 = memref.load %arg1[%c2_19] : memref<4xf32, #tpu.memory_space<smem>>
    %19 = vector.broadcast %18 : f32 to vector<2x16x16xf32>
    %20 = arith.mulf %17, %19 : vector<2x16x16xf32>
    %21 = arith.addf %15, %20 : vector<2x16x16xf32>
    %c0_20 = arith.constant 0 : index
    %c3 = arith.constant 3 : index
    %c0_21 = arith.constant 0 : index
    %c0_22 = arith.constant 0 : index
    %22 = vector.load %arg0[%c0_20, %c3, %c0_21, %c0_22] : memref<2x4x16x16xf32, #tpu.memory_space<vmem>>, vector<2x1x16x16xf32>
    %23 = vector.shape_cast %22 : vector<2x1x16x16xf32> to vector<2x16x16xf32>
    %c3_23 = arith.constant 3 : index
    %24 = memref.load %arg1[%c3_23] : memref<4xf32, #tpu.memory_space<smem>>
    %25 = vector.broadcast %24 : f32 to vector<2x16x16xf32>
    %26 = arith.mulf %23, %25 : vector<2x16x16xf32>
    %27 = arith.addf %21, %26 : vector<2x16x16xf32>
    %28 = tpu.transpose %27, [0, 2, 1] : vector<2x16x16xf32> -> vector<2x16x16xf32>
    %29 = vector.shape_cast %28 : vector<2x16x16xf32> to vector<32x16xf32>
    %c0_24 = arith.constant 0 : index
    %c0_25 = arith.constant 0 : index
    %30 = vector.load %arg3[%c0_24, %c0_25] : memref<16x4xf32, #tpu.memory_space<vmem>>, vector<16x4xf32>
    %cst_26 = arith.constant dense<0.000000e+00> : vector<32x4xf32>
    %31 = tpu.matmul %29, %30, %cst_26 {dimension_numbers = #tpu.dot_dimension_numbers<[1], [0], [0], [1], [0, 0, 1, 1], [], []>} : vector<32x16xf32>, vector<16x4xf32>, vector<32x4xf32> -> vector<32x4xf32>
    %32 = vector.shape_cast %31 : vector<32x4xf32> to vector<2x16x4xf32>
    %33 = vector.extract_strided_slice %32 {offsets = [0, 0, 0], sizes = [2, 16, 1], strides = [1, 1, 1]} : vector<2x16x4xf32> to vector<2x16x1xf32>
    %34 = vector.extract_strided_slice %4 {offsets = [0, 0, 0], sizes = [2, 1, 16], strides = [1, 1, 1]} : vector<2x4x16xf32> to vector<2x1x16xf32>
    %35 = vector.broadcast %33 : vector<2x16x1xf32> to vector<2x16x16xf32>
    %36 = vector.broadcast %34 : vector<2x1x16xf32> to vector<2x16x16xf32>
    %37 = arith.mulf %35, %36 : vector<2x16x16xf32>
    %38 = vector.extract_strided_slice %32 {offsets = [0, 0, 1], sizes = [2, 16, 1], strides = [1, 1, 1]} : vector<2x16x4xf32> to vector<2x16x1xf32>
    %39 = vector.extract_strided_slice %4 {offsets = [0, 1, 0], sizes = [2, 1, 16], strides = [1, 1, 1]} : vector<2x4x16xf32> to vector<2x1x16xf32>
    %40 = vector.broadcast %38 : vector<2x16x1xf32> to vector<2x16x16xf32>
    %41 = vector.broadcast %39 : vector<2x1x16xf32> to vector<2x16x16xf32>
    %42 = arith.mulf %40, %41 : vector<2x16x16xf32>
    %43 = arith.addf %37, %42 : vector<2x16x16xf32>
    %44 = vector.extract_strided_slice %32 {offsets = [0, 0, 2], sizes = [2, 16, 1], strides = [1, 1, 1]} : vector<2x16x4xf32> to vector<2x16x1xf32>
    %45 = vector.extract_strided_slice %4 {offsets = [0, 2, 0], sizes = [2, 1, 16], strides = [1, 1, 1]} : vector<2x4x16xf32> to vector<2x1x16xf32>
    %46 = vector.broadcast %44 : vector<2x16x1xf32> to vector<2x16x16xf32>
    %47 = vector.broadcast %45 : vector<2x1x16xf32> to vector<2x16x16xf32>
    %48 = arith.mulf %46, %47 : vector<2x16x16xf32>
    %49 = arith.addf %43, %48 : vector<2x16x16xf32>
    %50 = vector.extract_strided_slice %32 {offsets = [0, 0, 3], sizes = [2, 16, 1], strides = [1, 1, 1]} : vector<2x16x4xf32> to vector<2x16x1xf32>
    %51 = vector.extract_strided_slice %4 {offsets = [0, 3, 0], sizes = [2, 1, 16], strides = [1, 1, 1]} : vector<2x4x16xf32> to vector<2x1x16xf32>
    %52 = vector.broadcast %50 : vector<2x16x1xf32> to vector<2x16x16xf32>
    %53 = vector.broadcast %51 : vector<2x1x16xf32> to vector<2x16x16xf32>
    %54 = arith.mulf %52, %53 : vector<2x16x16xf32>
    %55 = arith.addf %49, %54 : vector<2x16x16xf32>
    %c0_27 = arith.constant 0 : index
    %c0_28 = arith.constant 0 : index
    %56 = vector.load %arg4[%c0_27, %c0_28] : memref<16x16xf32, #tpu.memory_space<vmem>>, vector<16x16xf32>
    %57 = vector.shape_cast %56 : vector<16x16xf32> to vector<1x16x16xf32>
    %58 = vector.broadcast %57 : vector<1x16x16xf32> to vector<2x16x16xf32>
    %59 = arith.addf %55, %58 : vector<2x16x16xf32>
    %60 = arith.negf %59 : vector<2x16x16xf32>
    %61 = math.exp %60 : vector<2x16x16xf32>
    %cst_29 = arith.constant 1.000000e+00 : f32
    %62 = vector.broadcast %cst_29 : f32 to vector<2x16x16xf32>
    %63 = arith.addf %62, %61 : vector<2x16x16xf32>
    %64 = arith.divf %62, %63 : vector<2x16x16xf32>
    %c0_30 = arith.constant 0 : index
    %c0_31 = arith.constant 0 : index
    %65 = vector.load %arg5[%c0_30, %c0_31] : memref<16x16xf32, #tpu.memory_space<vmem>>, vector<16x16xf32>
    %66 = vector.extract_strided_slice %64 {offsets = [0, 0, 0], sizes = [1, 16, 16], strides = [1, 1, 1]} : vector<2x16x16xf32> to vector<1x16x16xf32>
    %67 = vector.shape_cast %66 : vector<1x16x16xf32> to vector<16x16xf32>
    %cst_32 = arith.constant dense<0.000000e+00> : vector<16x16xf32>
    %68 = tpu.matmul %65, %67, %cst_32 {dimension_numbers = #tpu.dot_dimension_numbers<[1], [0], [0], [1], [0, 0, 1, 1], [], []>} : vector<16x16xf32>, vector<16x16xf32>, vector<16x16xf32> -> vector<16x16xf32>
    %c0_33 = arith.constant 0 : index
    %c0_34 = arith.constant 0 : index
    %69 = vector.load %arg5[%c0_33, %c0_34] : memref<16x16xf32, #tpu.memory_space<vmem>>, vector<16x16xf32>
    %70 = vector.extract_strided_slice %64 {offsets = [1, 0, 0], sizes = [1, 16, 16], strides = [1, 1, 1]} : vector<2x16x16xf32> to vector<1x16x16xf32>
    %71 = vector.shape_cast %70 : vector<1x16x16xf32> to vector<16x16xf32>
    %cst_35 = arith.constant dense<0.000000e+00> : vector<16x16xf32>
    %72 = tpu.matmul %69, %71, %cst_35 {dimension_numbers = #tpu.dot_dimension_numbers<[1], [0], [0], [1], [0, 0, 1, 1], [], []>} : vector<16x16xf32>, vector<16x16xf32>, vector<16x16xf32> -> vector<16x16xf32>
    %73 = vector.shape_cast %68 : vector<16x16xf32> to vector<1x16x16xf32>
    %74 = vector.shape_cast %72 : vector<16x16xf32> to vector<1x16x16xf32>
    %75 = tpu.concatenate %73, %74 in 0 : vector<1x16x16xf32>, vector<1x16x16xf32> -> vector<2x16x16xf32>
    %cst_36 = arith.constant dense<0.000000e+00> : vector<16xf32>
    %76 = vector.multi_reduction <add>, %75, %cst_36 [0, 1] : vector<2x16x16xf32> to vector<16xf32>
    %77 = vector.shape_cast %76 : vector<16xf32> to vector<1x1x16xf32>
    %cst_37 = arith.constant 3.125000e-02 : f32
    %78 = vector.broadcast %cst_37 : f32 to vector<1x1x16xf32>
    %79 = arith.mulf %77, %78 : vector<1x1x16xf32>
    %80 = arith.mulf %75, %75 : vector<2x16x16xf32>
    %cst_38 = arith.constant dense<0.000000e+00> : vector<16xf32>
    %81 = vector.multi_reduction <add>, %80, %cst_38 [0, 1] : vector<2x16x16xf32> to vector<16xf32>
    %82 = vector.shape_cast %81 : vector<16xf32> to vector<1x1x16xf32>
    %cst_39 = arith.constant 3.125000e-02 : f32
    %83 = vector.broadcast %cst_39 : f32 to vector<1x1x16xf32>
    %84 = arith.mulf %82, %83 : vector<1x1x16xf32>
    %85 = arith.mulf %79, %79 : vector<1x1x16xf32>
    %86 = arith.subf %84, %85 : vector<1x1x16xf32>
    %87 = vector.broadcast %79 : vector<1x1x16xf32> to vector<2x16x16xf32>
    %88 = arith.subf %75, %87 : vector<2x16x16xf32>
    %cst_40 = arith.constant 9.99999974E-6 : f32
    %89 = vector.broadcast %cst_40 : f32 to vector<1x1x16xf32>
    %90 = arith.addf %86, %89 : vector<1x1x16xf32>
    %91 = math.rsqrt %90 : vector<1x1x16xf32>
    %92 = vector.broadcast %91 : vector<1x1x16xf32> to vector<2x16x16xf32>
    %93 = arith.mulf %88, %92 : vector<2x16x16xf32>
    %c0_41 = arith.constant 0 : index
    %c0_42 = arith.constant 0 : index
    %c0_43 = arith.constant 0 : index
    %94 = vector.load %arg6[%c0_41, %c0_42, %c0_43] : memref<1x1x16xf32, #tpu.memory_space<vmem>>, vector<1x1x16xf32>
    %95 = vector.broadcast %94 : vector<1x1x16xf32> to vector<2x16x16xf32>
    %96 = arith.mulf %93, %95 : vector<2x16x16xf32>
    %c0_44 = arith.constant 0 : index
    %c0_45 = arith.constant 0 : index
    %c0_46 = arith.constant 0 : index
    %97 = vector.load %arg7[%c0_44, %c0_45, %c0_46] : memref<1x1x16xf32, #tpu.memory_space<vmem>>, vector<1x1x16xf32>
    %98 = vector.broadcast %97 : vector<1x1x16xf32> to vector<2x16x16xf32>
    %99 = arith.addf %96, %98 : vector<2x16x16xf32>
    %cst_47 = arith.constant dense<0xFF800000> : vector<2x16xf32>
    %100 = vector.multi_reduction <maximumf>, %99, %cst_47 [2] : vector<2x16x16xf32> to vector<2x16xf32>
    %101 = vector.shape_cast %100 : vector<2x16xf32> to vector<2x16x1xf32>
    %102 = vector.broadcast %101 : vector<2x16x1xf32> to vector<2x16x16xf32>
    %103 = arith.subf %99, %102 : vector<2x16x16xf32>
    %104 = math.exp %103 : vector<2x16x16xf32>
    %cst_48 = arith.constant dense<0.000000e+00> : vector<2x16xf32>
    %105 = vector.multi_reduction <add>, %104, %cst_48 [2] : vector<2x16x16xf32> to vector<2x16xf32>
    %106 = vector.shape_cast %105 : vector<2x16xf32> to vector<2x16x1xf32>
    %107 = vector.broadcast %106 : vector<2x16x1xf32> to vector<2x16x16xf32>
    %108 = arith.divf %104, %107 : vector<2x16x16xf32>
    %c0_49 = arith.constant 0 : index
    %c0_50 = arith.constant 0 : index
    %c0_51 = arith.constant 0 : index
    %109 = vector.load %arg8[%c0_49, %c0_50, %c0_51] : memref<2x16x16xf32, #tpu.memory_space<vmem>>, vector<2x16x16xf32>
    tpu.vector_store %arg8[%c0_49, %c0_50, %c0_51], %108 {strides = array<i32>} : memref<2x16x16xf32, #tpu.memory_space<vmem>>, vector<2x16x16xf32>,
    return
  }
}

</mosaic_0001>

<llo_original>
// kernel: tpu_custom_call.1
$region0: #{tpu_custom_call.1}
  #allocation0 [shape = 'u32[]', space=smem, size = 0x4, offset = 0x4, fixed_abs, tag = 'smem constant byte address 0x4 - core index']
  #allocation1 [shape = 'u32[144,128]{1,0:T(1,128)}', space=vmem, size = 0x12000, scoped, tag = 'internal scratch']
  %s0 = inlined_call_operand.hbm [shape: f32[2,4,16,16], index: 0, kind: input, shape index: {}]
  %s1 = inlined_call_operand.vmem [shape: f32[4], index: 1, kind: input, shape index: {}]
  %s2 = inlined_call_operand.vmem [shape: f32[1,1,16,1], index: 2, kind: input, shape index: {}]
  %s3 = inlined_call_operand.vmem [shape: f32[16,4], index: 3, kind: input, shape index: {}]
  %s4 = inlined_call_operand.vmem [shape: f32[16,16], index: 4, kind: input, shape index: {}]
  %s5 = inlined_call_operand.vmem [shape: f32[16,16], index: 5, kind: input, shape index: {}]
  %s6 = inlined_call_operand.vmem [shape: f32[1,1,16], index: 6, kind: input, shape index: {}]
  %s7 = inlined_call_operand.vmem [shape: f32[1,1,16], index: 7, kind: input, shape index: {}]
  %s8 = inlined_call_operand.hbm [shape: f32[2,16,16], index: 8, kind: output, shape index: {}]
  %s9 = sld [smem:[#allocation0]]
  $region50: #{tpu_custom_call.1} parent=0
    _
  %s11 = ssub.s32 1, %s9
  %s12 = scalar_select 0, %s11, %s9
  $region1: #{tpu_custom_call.1} parent=0
    #allocation2 [shape = 'u8[65536]{0}', space=vmem, size = 0x10000, scoped, tag = 'input window, operand 0, single buffered']
    #allocation3 [shape = 's32[1]{0}', space=sflag, size = 0x4, scoped, tag = 'scoped memory for tpu_custom_call.1']
    #allocation4 [shape = 's32[1]{0}', space=sflag, size = 0x4, scoped, tag = 'scoped memory for tpu_custom_call.1']
    #allocation5 [shape = 's32[1]{0}', space=sflag, size = 0x4, scoped, tag = 'scoped memory for tpu_custom_call.1']
    #allocation6 [shape = 'u8[512]{0}', space=smem, size = 0x200, scoped, tag = 'input window, operand 1, single buffered']
    #allocation7 [shape = 'u8[16384]{0}', space=vmem, size = 0x4000, scoped, tag = 'output window, operand 0, single buffered']
    %13 = vsyncpa [#allocation3], 0
    %14 = vsyncpa [#allocation5], 0
    %15 = vsyncpa [#allocation4], 0
    // Predicated region
    $region2: #{tpu_custom_call.1} parent=1 // pred_check
      _
    $region3: #{tpu_custom_call.1} parent=1 // pred_check_branch
      %17 = sbr.rel (0) target = $region5
    $region4: #{tpu_custom_call.1} parent=1 // pred_region
      %s19 = ssub.s32 2048, 2048
      %20 = vsyncadd [#allocation3], %s19
      %s21 = sshll.u32 [#allocation2], 4
      %s22 = int_to_ptr.vmem [resolvable:$true] %s21
      %27 = dma.hbm_to_vmem [thread:$0]  %s0, 2048, %s22, [#allocation3], 128, 128, 8
    $region5: #{tpu_custom_call.1} parent=1 // pred_fallthru
      _
    // Predicated region
    $region6: #{tpu_custom_call.1} parent=1 // pred_check
      _
    $region7: #{tpu_custom_call.1} parent=1 // pred_check_branch
      %29 = sbr.rel (0) target = $region9
    $region8: #{tpu_custom_call.1} parent=1 // pred_region
      %s31 = ssub.s32 16, 16
      %32 = vsyncadd [#allocation5], %s31
      %s34 = sshll.u32 %s1, 4
      %s35 = int_to_ptr.vmem [resolvable:$true] %s34
      %37 = dma.vmem_to_smem %s35, 16, [#allocation6], [#allocation5]
    $region9: #{tpu_custom_call.1} parent=1 // pred_fallthru
      _
    // Predicated region
    $region10: #{tpu_custom_call.1} parent=1 // pred_check
      _
    $region11: #{tpu_custom_call.1} parent=1 // pred_check_branch
      %39 = sbr.rel (0) target = $region13
    $region12: #{tpu_custom_call.1} parent=1 // pred_region
      _
    $region13: #{tpu_custom_call.1} parent=1 // pred_fallthru
      _
    // Predicated region
    $region14: #{tpu_custom_call.1} parent=1 // pred_check
      _
    $region15: #{tpu_custom_call.1} parent=1 // pred_check_branch
      %41 = sbr.rel (0) target = $region17
    $region16: #{tpu_custom_call.1} parent=1 // pred_region
      _
    $region17: #{tpu_custom_call.1} parent=1 // pred_fallthru
      _
    // Predicated region
    $region18: #{tpu_custom_call.1} parent=1 // pred_check
      _
    $region19: #{tpu_custom_call.1} parent=1 // pred_check_branch
      %43 = sbr.rel (0) target = $region21
    $region20: #{tpu_custom_call.1} parent=1 // pred_region
      _
    $region21: #{tpu_custom_call.1} parent=1 // pred_fallthru
      _
    // Predicated region
    $region22: #{tpu_custom_call.1} parent=1 // pred_check
      _
    $region23: #{tpu_custom_call.1} parent=1 // pred_check_branch
      %45 = sbr.rel (0) target = $region25
    $region24: #{tpu_custom_call.1} parent=1 // pred_region
      _
    $region25: #{tpu_custom_call.1} parent=1 // pred_fallthru
      _
    // Predicated region
    $region26: #{tpu_custom_call.1} parent=1 // pred_check
      _
    $region27: #{tpu_custom_call.1} parent=1 // pred_check_branch
      %47 = sbr.rel (0) target = $region29
    $region28: #{tpu_custom_call.1} parent=1 // pred_region
      _
    $region29: #{tpu_custom_call.1} parent=1 // pred_fallthru
      _
    // Predicated region
    $region30: #{tpu_custom_call.1} parent=1 // pred_check
      _
    $region31: #{tpu_custom_call.1} parent=1 // pred_check_branch
      %49 = sbr.rel (0) target = $region33
    $region32: #{tpu_custom_call.1} parent=1 // pred_region
      _
    $region33: #{tpu_custom_call.1} parent=1 // pred_fallthru
      _
    // Predicated region
    $region34: #{tpu_custom_call.1} parent=1 // pred_check
      _
    $region35: #{tpu_custom_call.1} parent=1 // pred_check_branch
      %51 = sbr.rel (0) target = $region37
    $region36: #{tpu_custom_call.1} parent=1 // pred_region
      %52 = dma.done [#allocation3], 2048
    $region37: #{tpu_custom_call.1} parent=1 // pred_fallthru
      _
    // Predicated region
    $region38: #{tpu_custom_call.1} parent=1 // pred_check
      _
    $region39: #{tpu_custom_call.1} parent=1 // pred_check_branch
      %54 = sbr.rel (0) target = $region41
    $region40: #{tpu_custom_call.1} parent=1 // pred_region
      %55 = dma.done [#allocation5], 16
    $region41: #{tpu_custom_call.1} parent=1 // pred_fallthru
      _
    %56 = sfence
    %v57 = vld [vmem:[#allocation2] sm:$0xff]
    %v58 = vld [vmem:[#allocation2 + $0x8] sm:$0xff]
    %v59 = vld [vmem:[#allocation2 + $0x10] sm:$0xff]
    %v60 = vld [vmem:[#allocation2 + $0x18] sm:$0xff]
    %v61 = vld [vmem:[#allocation2 + $0x20] sm:$0xff]
    %v62 = vld [vmem:[#allocation2 + $0x28] sm:$0xff]
    %v63 = vld [vmem:[#allocation2 + $0x30] sm:$0xff]
    %v64 = vld [vmem:[#allocation2 + $0x38] sm:$0xff]
    %v65 = vld [vmem:[#allocation2 + $0x40] sm:$0xff]
    %v66 = vld [vmem:[#allocation2 + $0x48] sm:$0xff]
    %v67 = vld [vmem:[#allocation2 + $0x50] sm:$0xff]
    %v68 = vld [vmem:[#allocation2 + $0x58] sm:$0xff]
    %v69 = vld [vmem:[#allocation2 + $0x60] sm:$0xff]
    %v70 = vld [vmem:[#allocation2 + $0x68] sm:$0xff]
    %v71 = vld [vmem:[#allocation2 + $0x70] sm:$0xff]
    %v72 = vld [vmem:[#allocation2 + $0x78] sm:$0xff]
    %v73 = vld [vmem:[%s2] sm:$0xff]
    %v74 = vld [vmem:[%s2 + $0x8] sm:$0xff]
    %76 = vset.pattern.permute.xlu0 0
    %77 = vperm.xlu0 %76, %v73
    %v78 = vpop.permute.xlu0 %77
    %81 = vset.pattern.permute.xlu0 0
    %82 = vperm.xlu0 %81, %v74
    %v83 = vpop.permute.xlu0 %82
    %v85 = vmul.f32 %v57, %v78
    %v86 = vmul.f32 %v58, %v83
    %v87 = vmul.f32 %v59, %v78
    %v88 = vmul.f32 %v60, %v83
    %v89 = vmul.f32 %v61, %v78
    %v90 = vmul.f32 %v62, %v83
    %v91 = vmul.f32 %v63, %v78
    %v92 = vmul.f32 %v64, %v83
    %v93 = vmul.f32 %v65, %v78
    %v94 = vmul.f32 %v66, %v83
    %v95 = vmul.f32 %v67, %v78
    %v96 = vmul.f32 %v68, %v83
    %v97 = vmul.f32 %v69, %v78
    %v98 = vmul.f32 %v70, %v83
    %v99 = vmul.f32 %v71, %v78
    %v100 = vmul.f32 %v72, %v83
    %vm101 = vcmask 130048
    %v102 = vsel %vm101, %v85, 0.0
    %v103 = vsel %vm101, %v86, 0.0
    %v104 = vadd.f32 %v102, %v103
    %v105 = vrot.slane %v104, 4
    %v106 = vadd.f32 %v104, %v105
    %v107 = vrot.slane %v106, 2
    %v108 = vadd.f32 %v106, %v107
    %v109 = vrot.slane %v108, 1
    %v110 = vadd.f32 %v108, %v109
    %v111 = vsel %vm101, %v87, 0.0
    %v112 = vsel %vm101, %v88, 0.0
    %v113 = vadd.f32 %v111, %v112
    %v114 = vrot.slane %v113, 4
    %v115 = vadd.f32 %v113, %v114
    %v116 = vrot.slane %v115, 2
    %v117 = vadd.f32 %v115, %v116
    %v118 = vrot.slane %v117, 1
    %v119 = vadd.f32 %v117, %v118
    %v120 = vsel %vm101, %v89, 0.0
    %v121 = vsel %vm101, %v90, 0.0
    %v122 = vadd.f32 %v120, %v121
    %v123 = vrot.slane %v122, 4
    %v124 = vadd.f32 %v122, %v123
    %v125 = vrot.slane %v124, 2
    %v126 = vadd.f32 %v124, %v125
    %v127 = vrot.slane %v126, 1
    %v128 = vadd.f32 %v126, %v127
    %v129 = vsel %vm101, %v91, 0.0
    %v130 = vsel %vm101, %v92, 0.0
    %v131 = vadd.f32 %v129, %v130
    %v132 = vrot.slane %v131, 4
    %v133 = vadd.f32 %v131, %v132
    %v134 = vrot.slane %v133, 2
    %v135 = vadd.f32 %v133, %v134
    %v136 = vrot.slane %v135, 1
    %v137 = vadd.f32 %v135, %v136
    %v138 = vsel %vm101, %v93, 0.0
    %v139 = vsel %vm101, %v94, 0.0
    %v140 = vadd.f32 %v138, %v139
    %v141 = vrot.slane %v140, 4
    %v142 = vadd.f32 %v140, %v141
    %v143 = vrot.slane %v142, 2
    %v144 = vadd.f32 %v142, %v143
    %v145 = vrot.slane %v144, 1
    %v146 = vadd.f32 %v144, %v145
    %v147 = vsel %vm101, %v95, 0.0
    %v148 = vsel %vm101, %v96, 0.0
    %v149 = vadd.f32 %v147, %v148
    %v150 = vrot.slane %v149, 4
    %v151 = vadd.f32 %v149, %v150
    %v152 = vrot.slane %v151, 2
    %v153 = vadd.f32 %v151, %v152
    %v154 = vrot.slane %v153, 1
    %v155 = vadd.f32 %v153, %v154
    %v156 = vsel %vm101, %v97, 0.0
    %v157 = vsel %vm101, %v98, 0.0
    %v158 = vadd.f32 %v156, %v157
    %v159 = vrot.slane %v158, 4
    %v160 = vadd.f32 %v158, %v159
    %v161 = vrot.slane %v160, 2
    %v162 = vadd.f32 %v160, %v161
    %v163 = vrot.slane %v162, 1
    %v164 = vadd.f32 %v162, %v163
    %v165 = vsel %vm101, %v99, 0.0
    %v166 = vsel %vm101, %v100, 0.0
    %v167 = vadd.f32 %v165, %v166
    %v168 = vrot.slane %v167, 4
    %v169 = vadd.f32 %v167, %v168
    %v170 = vrot.slane %v169, 2
    %v171 = vadd.f32 %v169, %v170
    %v172 = vrot.slane %v171, 1
    %v173 = vadd.f32 %v171, %v172
    %v174 = vld [vmem:[#allocation2] sm:$0xff]
    %v175 = vld [vmem:[#allocation2 + $0x8] sm:$0xff]
    %v176 = vld [vmem:[#allocation2 + $0x40] sm:$0xff]
    %v177 = vld [vmem:[#allocation2 + $0x48] sm:$0xff]
    %s178 = sld [smem:[#allocation6]]
    %v179 = vstv %s178
    %v180 = vmul.f32 %v174, %v179
    %v181 = vmul.f32 %v175, %v179
    %v182 = vmul.f32 %v176, %v179
    %v183 = vmul.f32 %v177, %v179
    %s184 = scalar_lea.vmem [#allocation2], 16
    %v185 = vld [vmem:[%s184] sm:$0xff]
    %v186 = vld [vmem:[%s184 + $0x8] sm:$0xff]
    %v187 = vld [vmem:[%s184 + $0x40] sm:$0xff]
    %v188 = vld [vmem:[%s184 + $0x48] sm:$0xff]
    %s189 = sld [smem:[#allocation6 + $0x1]]
    %v190 = vstv %s189
    %v191 = vmul.f32 %v185, %v190
    %v192 = vmul.f32 %v186, %v190
    %v193 = vmul.f32 %v187, %v190
    %v194 = vmul.f32 %v188, %v190
    %v195 = vadd.f32 %v180, %v191
    %v196 = vadd.f32 %v181, %v192
    %v197 = vadd.f32 %v182, %v193
    %v198 = vadd.f32 %v183, %v194
    %s199 = scalar_lea.vmem [#allocation2], 32
    %v200 = vld [vmem:[%s199] sm:$0xff]
    %v201 = vld [vmem:[%s199 + $0x8] sm:$0xff]
    %v202 = vld [vmem:[%s199 + $0x40] sm:$0xff]
    %v203 = vld [vmem:[%s199 + $0x48] sm:$0xff]
    %s204 = sld [smem:[#allocation6 + $0x2]]
    %v205 = vstv %s204
    %v206 = vmul.f32 %v200, %v205
    %v207 = vmul.f32 %v201, %v205
    %v208 = vmul.f32 %v202, %v205
    %v209 = vmul.f32 %v203, %v205
    %v210 = vadd.f32 %v195, %v206
    %v211 = vadd.f32 %v196, %v207
    %v212 = vadd.f32 %v197, %v208
    %v213 = vadd.f32 %v198, %v209
    %s214 = scalar_lea.vmem [#allocation2], 48
    %v215 = vld [vmem:[%s214] sm:$0xff]
    %v216 = vld [vmem:[%s214 + $0x8] sm:$0xff]
    %v217 = vld [vmem:[%s214 + $0x40] sm:$0xff]
    %v218 = vld [vmem:[%s214 + $0x48] sm:$0xff]
    %s219 = sld [smem:[#allocation6 + $0x3]]
    %v220 = vstv %s219
    %v221 = vmul.f32 %v215, %v220
    %v222 = vmul.f32 %v216, %v220
    %v223 = vmul.f32 %v217, %v220
    %v224 = vmul.f32 %v218, %v220
    %v225 = vadd.f32 %v210, %v221
    %v226 = vadd.f32 %v211, %v222
    %v227 = vadd.f32 %v212, %v223
    %v228 = vadd.f32 %v213, %v224
    %229 = vxpose.xlu0.b32.start [1/16] %v225, 128
    %230 = vxpose.xlu0.b32.cont [2/16] %v226, 128
    %231 = vxpose.xlu0.b32.cont [3/16] 0.0, 128
    %232 = vxpose.xlu0.b32.cont [4/16] 0.0, 128
    %233 = vxpose.xlu0.b32.cont [5/16] 0.0, 128
    %234 = vxpose.xlu0.b32.cont [6/16] 0.0, 128
    %235 = vxpose.xlu0.b32.cont [7/16] 0.0, 128
    %236 = vxpose.xlu0.b32.cont [8/16] 0.0, 128
    %237 = vxpose.xlu0.b32.cont [9/16] 0.0, 128
    %238 = vxpose.xlu0.b32.cont [10/16] 0.0, 128
    %239 = vxpose.xlu0.b32.cont [11/16] 0.0, 128
    %240 = vxpose.xlu0.b32.cont [12/16] 0.0, 128
    %241 = vxpose.xlu0.b32.cont [13/16] 0.0, 128
    %242 = vxpose.xlu0.b32.cont [14/16] 0.0, 128
    %243 = vxpose.xlu0.b32.cont [15/16] 0.0, 128
    %244 = vxpose.xlu0.b32.end [16/16] 0.0, 128
    %v245 = vpop.trf.xlu0
    %v246 = vpop.trf.xlu0
    %v247 = vpop.trf.xlu0
    %v248 = vpop.trf.xlu0
    %v249 = vpop.trf.xlu0
    %v250 = vpop.trf.xlu0
    %v251 = vpop.trf.xlu0
    %v252 = vpop.trf.xlu0
    %v253 = vpop.trf.xlu0
    %v254 = vpop.trf.xlu0
    %v255 = vpop.trf.xlu0
    %v256 = vpop.trf.xlu0
    %v257 = vpop.trf.xlu0
    %v258 = vpop.trf.xlu0
    %v259 = vpop.trf.xlu0
    %v260 = vpop.trf.xlu0
    %261 = vxpose.xlu0.b32.start [1/16] %v227, 128
    %262 = vxpose.xlu0.b32.cont [2/16] %v228, 128
    %263 = vxpose.xlu0.b32.cont [3/16] 0.0, 128
    %264 = vxpose.xlu0.b32.cont [4/16] 0.0, 128
    %265 = vxpose.xlu0.b32.cont [5/16] 0.0, 128
    %266 = vxpose.xlu0.b32.cont [6/16] 0.0, 128
    %267 = vxpose.xlu0.b32.cont [7/16] 0.0, 128
    %268 = vxpose.xlu0.b32.cont [8/16] 0.0, 128
    %269 = vxpose.xlu0.b32.cont [9/16] 0.0, 128
    %270 = vxpose.xlu0.b32.cont [10/16] 0.0, 128
    %271 = vxpose.xlu0.b32.cont [11/16] 0.0, 128
    %272 = vxpose.xlu0.b32.cont [12/16] 0.0, 128
    %273 = vxpose.xlu0.b32.cont [13/16] 0.0, 128
    %274 = vxpose.xlu0.b32.cont [14/16] 0.0, 128
    %275 = vxpose.xlu0.b32.cont [15/16] 0.0, 128
    %276 = vxpose.xlu0.b32.end [16/16] 0.0, 128
    %v277 = vpop.trf.xlu0
    %v278 = vpop.trf.xlu0
    %v279 = vpop.trf.xlu0
    %v280 = vpop.trf.xlu0
    %v281 = vpop.trf.xlu0
    %v282 = vpop.trf.xlu0
    %v283 = vpop.trf.xlu0
    %v284 = vpop.trf.xlu0
    %v285 = vpop.trf.xlu0
    %v286 = vpop.trf.xlu0
    %v287 = vpop.trf.xlu0
    %v288 = vpop.trf.xlu0
    %v289 = vpop.trf.xlu0
    %v290 = vpop.trf.xlu0
    %v291 = vpop.trf.xlu0
    %v292 = vpop.trf.xlu0
    %v293 = vld [vmem:[%s3] sm:$0xff]
    %v294 = vld [vmem:[%s3 + $0x8] sm:$0xff]
    %v296 = vsel %vm101, %v245, 0
    %v299 = vsel %vm101, %v246, 0
    %v302 = vsel %vm101, %v277, 0
    %v305 = vsel %vm101, %v278, 0
    %307 = vmatprep.subr.mxu0 0.0
    %308 = vmatpush1.msra.mxu0 %v293
    %309 = vmatprep.subr.mxu0 0.0
    %310 = vmatpush1.msra.mxu0 %v294
    %311 = vmatprep.subr.mxu0 0.0
    %312 = vmatpush1.msra.mxu0 0.0
    %313 = vmatprep.subr.mxu0 0.0
    %314 = vmatpush1.msra.mxu0 0.0
    %315 = vmatprep.subr.mxu0 0.0
    %316 = vmatpush1.msra.mxu0 0.0
    %317 = vmatprep.subr.mxu0 0.0
    %318 = vmatpush1.msra.mxu0 0.0
    %319 = vmatprep.subr.mxu0 0.0
    %320 = vmatpush1.msra.mxu0 0.0
    %321 = vmatprep.subr.mxu0 0.0
    %322 = vmatpush1.msra.mxu0 0.0
    %323 = vmatprep.subr.mxu0 0.0
    %324 = vmatpush1.msra.mxu0 0.0
    %325 = vmatprep.subr.mxu0 0.0
    %326 = vmatpush1.msra.mxu0 0.0
    %327 = vmatprep.subr.mxu0 0.0
    %328 = vmatpush1.msra.mxu0 0.0
    %329 = vmatprep.subr.mxu0 0.0
    %330 = vmatpush1.msra.mxu0 0.0
    %331 = vmatprep.subr.mxu0 0.0
    %332 = vmatpush1.msra.mxu0 0.0
    %333 = vmatprep.subr.mxu0 0.0
    %334 = vmatpush1.msra.mxu0 0.0
    %335 = vmatprep.subr.mxu0 0.0
    %336 = vmatpush1.msra.mxu0 0.0
    %337 = vmatprep.subr.mxu0 0.0
    %338 = vmatpush1.msra.mxu0 0.0
    %339 = vmatprep.subr.mxu0 0.0
    %340 = vmatpush1.msra.mxu0 0.0
    %341 = vmatprep.subr.mxu0 0.0
    %342 = vmatpush1.msra.mxu0 0.0
    %343 = vmatprep.subr.mxu0 0.0
    %344 = vmatpush1.msra.mxu0 0.0
    %345 = vmatprep.subr.mxu0 0.0
    %346 = vmatpush1.msra.mxu0 0.0
    %347 = vmatprep.subr.mxu0 0.0
    %348 = vmatpush1.msra.mxu0 0.0
    %349 = vmatprep.subr.mxu0 0.0
    %350 = vmatpush1.msra.mxu0 0.0
    %351 = vmatprep.subr.mxu0 0.0
    %352 = vmatpush1.msra.mxu0 0.0
    %353 = vmatprep.subr.mxu0 0.0
    %354 = vmatpush1.msra.mxu0 0.0
    %355 = vmatprep.subr.mxu0 0.0
    %356 = vmatpush1.msra.mxu0 0.0
    %357 = vmatprep.subr.mxu0 0.0
    %358 = vmatpush1.msra.mxu0 0.0
    %359 = vmatprep.subr.mxu0 0.0
    %360 = vmatpush1.msra.mxu0 0.0
    %361 = vmatprep.subr.mxu0 0.0
    %362 = vmatpush1.msra.mxu0 0.0
    %363 = vmatprep.subr.mxu0 0.0
    %364 = vmatpush1.msra.mxu0 0.0
    %365 = vmatprep.subr.mxu0 0.0
    %366 = vmatpush1.msra.mxu0 0.0
    %367 = vmatprep.subr.mxu0 0.0
    %368 = vmatpush1.msra.mxu0 0.0
    %369 = vmatprep.subr.mxu0 0.0
    %370 = vmatpush1.msra.mxu0 0.0
    %371 = vmatprep.mubr.f32.mxu0 0.0
    %372 = vmatmul.mubr.f32.gmra.mrb[0].mxu0 %v296
    %v373 = vpop.f32.mrb[0].mxu0
    %v374 = vadd.f32 0.0, %v373
    %v375 = vpop.f32.mrb[0].mxu0
    %376 = vmatprep.mubr.f32.mxu0 0.0
    %377 = vmatmul.mubr.f32.gmra.mrb[0].mxu0 %v299
    %v378 = vpop.f32.mrb[0].mxu0
    %v379 = vadd.f32 0.0, %v378
    %v380 = vpop.f32.mrb[0].mxu0
    %381 = vmatprep.mubr.f32.mxu0 0.0
    %382 = vmatmul.mubr.f32.gmra.mrb[0].mxu0 %v302
    %v383 = vpop.f32.mrb[0].mxu0
    %v384 = vadd.f32 0.0, %v383
    %v385 = vpop.f32.mrb[0].mxu0
    %386 = vmatprep.mubr.f32.mxu0 0.0
    %387 = vmatmul.mubr.f32.gmra.mrb[0].mxu0 %v305
    %v388 = vpop.f32.mrb[0].mxu0
    %v389 = vadd.f32 0.0, %v388
    %v390 = vpop.f32.mrb[0].mxu0
    %391 = vdwg.mxu0
    %393 = vset.pattern.permute.xlu0 0
    %394 = vperm.xlu0 %393, %v374
    %v395 = vpop.permute.xlu0 %394
    %398 = vset.pattern.permute.xlu0 0
    %399 = vperm.xlu0 %398, %v379
    %v400 = vpop.permute.xlu0 %399
    %403 = vset.pattern.permute.xlu0 0
    %404 = vperm.xlu0 %403, %v384
    %v405 = vpop.permute.xlu0 %404
    %408 = vset.pattern.permute.xlu0 0
    %409 = vperm.xlu0 %408, %v389
    %v410 = vpop.permute.xlu0 %409
    %v412 = vmul.f32 %v395, %v110
    %v413 = vmul.f32 %v400, %v110
    %v414 = vmul.f32 %v405, %v146
    %v415 = vmul.f32 %v410, %v146
    %416 = vset.pattern.permute.xlu0 1
    %417 = vperm.xlu0 %416, %v374
    %v418 = vpop.permute.xlu0 %417
    %420 = vset.pattern.permute.xlu0 1
    %421 = vperm.xlu0 %420, %v379
    %v422 = vpop.permute.xlu0 %421
    %424 = vset.pattern.permute.xlu0 1
    %425 = vperm.xlu0 %424, %v384
    %v426 = vpop.permute.xlu0 %425
    %428 = vset.pattern.permute.xlu0 1
    %429 = vperm.xlu0 %428, %v389
    %v430 = vpop.permute.xlu0 %429
    %v432 = vmul.f32 %v418, %v119
    %v433 = vmul.f32 %v422, %v119
    %v434 = vmul.f32 %v426, %v155
    %v435 = vmul.f32 %v430, %v155
    %v436 = vadd.f32 %v412, %v432
    %v437 = vadd.f32 %v413, %v433
    %v438 = vadd.f32 %v414, %v434
    %v439 = vadd.f32 %v415, %v435
    %440 = vset.pattern.permute.xlu0 2
    %441 = vperm.xlu0 %440, %v374
    %v442 = vpop.permute.xlu0 %441
    %444 = vset.pattern.permute.xlu0 2
    %445 = vperm.xlu0 %444, %v379
    %v446 = vpop.permute.xlu0 %445
    %448 = vset.pattern.permute.xlu0 2
    %449 = vperm.xlu0 %448, %v384
    %v450 = vpop.permute.xlu0 %449
    %452 = vset.pattern.permute.xlu0 2
    %453 = vperm.xlu0 %452, %v389
    %v454 = vpop.permute.xlu0 %453
    %v456 = vmul.f32 %v442, %v128
    %v457 = vmul.f32 %v446, %v128
    %v458 = vmul.f32 %v450, %v164
    %v459 = vmul.f32 %v454, %v164
    %v460 = vadd.f32 %v436, %v456
    %v461 = vadd.f32 %v437, %v457
    %v462 = vadd.f32 %v438, %v458
    %v463 = vadd.f32 %v439, %v459
    %464 = vset.pattern.permute.xlu0 3
    %465 = vperm.xlu0 %464, %v374
    %v466 = vpop.permute.xlu0 %465
    %468 = vset.pattern.permute.xlu0 3
    %469 = vperm.xlu0 %468, %v379
    %v470 = vpop.permute.xlu0 %469
    %472 = vset.pattern.permute.xlu0 3
    %473 = vperm.xlu0 %472, %v384
    %v474 = vpop.permute.xlu0 %473
    %476 = vset.pattern.permute.xlu0 3
    %477 = vperm.xlu0 %476, %v389
    %v478 = vpop.permute.xlu0 %477
    %v480 = vmul.f32 %v466, %v137
    %v481 = vmul.f32 %v470, %v137
    %v482 = vmul.f32 %v474, %v173
    %v483 = vmul.f32 %v478, %v173
    %v484 = vadd.f32 %v460, %v480
    %v485 = vadd.f32 %v461, %v481
    %v486 = vadd.f32 %v462, %v482
    %v487 = vadd.f32 %v463, %v483
    %v488 = vld [vmem:[%s4] sm:$0xff]
    %v489 = vld [vmem:[%s4 + $0x8] sm:$0xff]
    %v490 = vadd.f32 %v484, %v488
    %v491 = vadd.f32 %v485, %v489
    %v492 = vadd.f32 %v486, %v488
    %v493 = vadd.f32 %v487, %v489
    %v494 = vxor.u32 %v490, 2147483648
    %v495 = vxor.u32 %v491, 2147483648
    %v496 = vxor.u32 %v492, 2147483648
    %v497 = vxor.u32 %v493, 2147483648
    %v498 = vmul.f32 %v494, 1.442695
    %v499 = vpow.pop %v498
    %v500 = vmul.f32 %v495, 1.442695
    %v501 = vpow.pop %v500
    %v502 = vmul.f32 %v496, 1.442695
    %v503 = vpow.pop %v502
    %v504 = vmul.f32 %v497, 1.442695
    %v505 = vpow.pop %v504
    %v506 = vadd.f32 %v499, 1.0
    %v507 = vadd.f32 %v501, 1.0
    %v508 = vadd.f32 %v503, 1.0
    %v509 = vadd.f32 %v505, 1.0
    %v510 = vrcp.pop %v506
    %v511 = vmul.f32 1.0, %v510
    %v512 = vrcp.pop %v507
    %v513 = vmul.f32 1.0, %v512
    %v514 = vrcp.pop %v508
    %v515 = vmul.f32 1.0, %v514
    %v516 = vrcp.pop %v509
    %v517 = vmul.f32 1.0, %v516
    %v518 = vld [vmem:[%s5] sm:$0xff]
    %v519 = vld [vmem:[%s5 + $0x8] sm:$0xff]
    %v521 = vsel %vm101, %v518, 0
    %v524 = vsel %vm101, %v519, 0
    %526 = vmatprep.subr.mxu0 0.0
    %527 = vmatpush1.msra.mxu0 %v511
    %528 = vmatprep.subr.mxu0 0.0
    %529 = vmatpush1.msra.mxu0 %v513
    %530 = vmatprep.subr.mxu0 0.0
    %531 = vmatpush1.msra.mxu0 0.0
    %532 = vmatprep.subr.mxu0 0.0
    %533 = vmatpush1.msra.mxu0 0.0
    %534 = vmatprep.subr.mxu0 0.0
    %535 = vmatpush1.msra.mxu0 0.0
    %536 = vmatprep.subr.mxu0 0.0
    %537 = vmatpush1.msra.mxu0 0.0
    %538 = vmatprep.subr.mxu0 0.0
    %539 = vmatpush1.msra.mxu0 0.0
    %540 = vmatprep.subr.mxu0 0.0
    %541 = vmatpush1.msra.mxu0 0.0
    %542 = vmatprep.subr.mxu0 0.0
    %543 = vmatpush1.msra.mxu0 0.0
    %544 = vmatprep.subr.mxu0 0.0
    %545 = vmatpush1.msra.mxu0 0.0
    %546 = vmatprep.subr.mxu0 0.0
    %547 = vmatpush1.msra.mxu0 0.0
    %548 = vmatprep.subr.mxu0 0.0
    %549 = vmatpush1.msra.mxu0 0.0
    %550 = vmatprep.subr.mxu0 0.0
    %551 = vmatpush1.msra.mxu0 0.0
    %552 = vmatprep.subr.mxu0 0.0
    %553 = vmatpush1.msra.mxu0 0.0
    %554 = vmatprep.subr.mxu0 0.0
    %555 = vmatpush1.msra.mxu0 0.0
    %556 = vmatprep.subr.mxu0 0.0
    %557 = vmatpush1.msra.mxu0 0.0
    %558 = vmatprep.subr.mxu0 0.0
    %559 = vmatpush1.msra.mxu0 0.0
    %560 = vmatprep.subr.mxu0 0.0
    %561 = vmatpush1.msra.mxu0 0.0
    %562 = vmatprep.subr.mxu0 0.0
    %563 = vmatpush1.msra.mxu0 0.0
    %564 = vmatprep.subr.mxu0 0.0
    %565 = vmatpush1.msra.mxu0 0.0
    %566 = vmatprep.subr.mxu0 0.0
    %567 = vmatpush1.msra.mxu0 0.0
    %568 = vmatprep.subr.mxu0 0.0
    %569 = vmatpush1.msra.mxu0 0.0
    %570 = vmatprep.subr.mxu0 0.0
    %571 = vmatpush1.msra.mxu0 0.0
    %572 = vmatprep.subr.mxu0 0.0
    %573 = vmatpush1.msra.mxu0 0.0
    %574 = vmatprep.subr.mxu0 0.0
    %575 = vmatpush1.msra.mxu0 0.0
    %576 = vmatprep.subr.mxu0 0.0
    %577 = vmatpush1.msra.mxu0 0.0
    %578 = vmatprep.subr.mxu0 0.0
    %579 = vmatpush1.msra.mxu0 0.0
    %580 = vmatprep.subr.mxu0 0.0
    %581 = vmatpush1.msra.mxu0 0.0
    %582 = vmatprep.subr.mxu0 0.0
    %583 = vmatpush1.msra.mxu0 0.0
    %584 = vmatprep.subr.mxu0 0.0
    %585 = vmatpush1.msra.mxu0 0.0
    %586 = vmatprep.subr.mxu0 0.0
    %587 = vmatpush1.msra.mxu0 0.0
    %588 = vmatprep.subr.mxu0 0.0
    %589 = vmatpush1.msra.mxu0 0.0
    %590 = vmatprep.mubr.f32.mxu0 0.0
    %591 = vmatmul.mubr.f32.gmra.mrb[0].mxu0 %v521
    %v592 = vpop.f32.mrb[0].mxu0
    %v593 = vadd.f32 0.0, %v592
    %v594 = vpop.f32.mrb[0].mxu0
    %595 = vmatprep.mubr.f32.mxu0 0.0
    %596 = vmatmul.mubr.f32.gmra.mrb[0].mxu0 %v524
    %v597 = vpop.f32.mrb[0].mxu0
    %v598 = vadd.f32 0.0, %v597
    %v599 = vpop.f32.mrb[0].mxu0
    %600 = vdwg.mxu0
    %601 = vmatprep.subr.mxu0 0.0
    %602 = vmatpush1.msra.mxu0 %v515
    %603 = vmatprep.subr.mxu0 0.0
    %604 = vmatpush1.msra.mxu0 %v517
    %605 = vmatprep.subr.mxu0 0.0
    %606 = vmatpush1.msra.mxu0 0.0
    %607 = vmatprep.subr.mxu0 0.0
    %608 = vmatpush1.msra.mxu0 0.0
    %609 = vmatprep.subr.mxu0 0.0
    %610 = vmatpush1.msra.mxu0 0.0
    %611 = vmatprep.subr.mxu0 0.0
    %612 = vmatpush1.msra.mxu0 0.0
    %613 = vmatprep.subr.mxu0 0.0
    %614 = vmatpush1.msra.mxu0 0.0
    %615 = vmatprep.subr.mxu0 0.0
    %616 = vmatpush1.msra.mxu0 0.0
    %617 = vmatprep.subr.mxu0 0.0
    %618 = vmatpush1.msra.mxu0 0.0
    %619 = vmatprep.subr.mxu0 0.0
    %620 = vmatpush1.msra.mxu0 0.0
    %621 = vmatprep.subr.mxu0 0.0
    %622 = vmatpush1.msra.mxu0 0.0
    %623 = vmatprep.subr.mxu0 0.0
    %624 = vmatpush1.msra.mxu0 0.0
    %625 = vmatprep.subr.mxu0 0.0
    %626 = vmatpush1.msra.mxu0 0.0
    %627 = vmatprep.subr.mxu0 0.0
    %628 = vmatpush1.msra.mxu0 0.0
    %629 = vmatprep.subr.mxu0 0.0
    %630 = vmatpush1.msra.mxu0 0.0
    %631 = vmatprep.subr.mxu0 0.0
    %632 = vmatpush1.msra.mxu0 0.0
    %633 = vmatprep.subr.mxu0 0.0
    %634 = vmatpush1.msra.mxu0 0.0
    %635 = vmatprep.subr.mxu0 0.0
    %636 = vmatpush1.msra.mxu0 0.0
    %637 = vmatprep.subr.mxu0 0.0
    %638 = vmatpush1.msra.mxu0 0.0
    %639 = vmatprep.subr.mxu0 0.0
    %640 = vmatpush1.msra.mxu0 0.0
    %641 = vmatprep.subr.mxu0 0.0
    %642 = vmatpush1.msra.mxu0 0.0
    %643 = vmatprep.subr.mxu0 0.0
    %644 = vmatpush1.msra.mxu0 0.0
    %645 = vmatprep.subr.mxu0 0.0
    %646 = vmatpush1.msra.mxu0 0.0
    %647 = vmatprep.subr.mxu0 0.0
    %648 = vmatpush1.msra.mxu0 0.0
    %649 = vmatprep.subr.mxu0 0.0
    %650 = vmatpush1.msra.mxu0 0.0
    %651 = vmatprep.subr.mxu0 0.0
    %652 = vmatpush1.msra.mxu0 0.0
    %653 = vmatprep.subr.mxu0 0.0
    %654 = vmatpush1.msra.mxu0 0.0
    %655 = vmatprep.subr.mxu0 0.0
    %656 = vmatpush1.msra.mxu0 0.0
    %657 = vmatprep.subr.mxu0 0.0
    %658 = vmatpush1.msra.mxu0 0.0
    %659 = vmatprep.subr.mxu0 0.0
    %660 = vmatpush1.msra.mxu0 0.0
    %661 = vmatprep.subr.mxu0 0.0
    %662 = vmatpush1.msra.mxu0 0.0
    %663 = vmatprep.subr.mxu0 0.0
    %664 = vmatpush1.msra.mxu0 0.0
    %665 = vmatprep.mubr.f32.mxu0 0.0
    %666 = vmatmul.mubr.f32.gmra.mrb[0].mxu0 %v521
    %v667 = vpop.f32.mrb[0].mxu0
    %v668 = vadd.f32 0.0, %v667
    %v669 = vpop.f32.mrb[0].mxu0
    %670 = vmatprep.mubr.f32.mxu0 0.0
    %671 = vmatmul.mubr.f32.gmra.mrb[0].mxu0 %v524
    %v672 = vpop.f32.mrb[0].mxu0
    %v673 = vadd.f32 0.0, %v672
    %v674 = vpop.f32.mrb[0].mxu0
    %675 = vdwg.mxu0
    %v676 = vsel %vm101, %v593, 0.0
    %v677 = vsel %vm101, %v598, 0.0
    %v678 = vadd.f32 %v676, %v677
    %v679 = vsel %vm101, %v668, 0.0
    %v680 = vadd.f32 %v678, %v679
    %v681 = vsel %vm101, %v673, 0.0
    %v682 = vadd.f32 %v680, %v681
    %v683 = vrot.slane %v682, 4
    %v684 = vadd.f32 %v682, %v683
    %v685 = vrot.slane %v684, 2
    %v686 = vadd.f32 %v684, %v685
    %v687 = vrot.slane %v686, 1
    %v688 = vadd.f32 %v686, %v687
    %v689 = vmul.f32 %v688, 0.03125
    %v690 = vmul.f32 %v593, %v593
    %v691 = vmul.f32 %v598, %v598
    %v692 = vmul.f32 %v668, %v668
    %v693 = vmul.f32 %v673, %v673
    %v694 = vsel %vm101, %v690, 0.0
    %v695 = vsel %vm101, %v691, 0.0
    %v696 = vadd.f32 %v694, %v695
    %v697 = vsel %vm101, %v692, 0.0
    %v698 = vadd.f32 %v696, %v697
    %v699 = vsel %vm101, %v693, 0.0
    %v700 = vadd.f32 %v698, %v699
    %v701 = vrot.slane %v700, 4
    %v702 = vadd.f32 %v700, %v701
    %v703 = vrot.slane %v702, 2
    %v704 = vadd.f32 %v702, %v703
    %v705 = vrot.slane %v704, 1
    %v706 = vadd.f32 %v704, %v705
    %v707 = vmul.f32 %v706, 0.03125
    %v708 = vmul.f32 %v689, %v689
    %v709 = vsub.f32 %v707, %v708
    %v710 = vsub.f32 %v593, %v689
    %v711 = vsub.f32 %v598, %v689
    %v712 = vsub.f32 %v668, %v689
    %v713 = vsub.f32 %v673, %v689
    %v714 = vadd.f32 %v709, 1e-05
    %v715 = vrsqrt.pop %v714
    %v716 = vmul.f32 %v710, %v715
    %v717 = vmul.f32 %v711, %v715
    %v718 = vmul.f32 %v712, %v715
    %v719 = vmul.f32 %v713, %v715
    %v720 = vld [vmem:[%s6] sm:$0x1]
    %v722 = vlaneseq
    %v723 = vshrl.u32 %v722, 7
    %v724 = vsub.s32 0, %v723
    %v725 = vrot.slane %v720, %v724
    %v727 = vmul.f32 %v716, %v725
    %v728 = vmul.f32 %v717, %v725
    %v729 = vmul.f32 %v718, %v725
    %v730 = vmul.f32 %v719, %v725
    %v731 = vld [vmem:[%s7] sm:$0x1]
    %v733 = vlaneseq
    %v734 = vshrl.u32 %v733, 7
    %v735 = vsub.s32 0, %v734
    %v736 = vrot.slane %v731, %v735
    %v738 = vadd.f32 %v727, %v736
    %v739 = vadd.f32 %v728, %v736
    %v740 = vadd.f32 %v729, %v736
    %v741 = vadd.f32 %v730, %v736
    %v742 = vsel %vm101, %v738, -inf
    %743 = vmax.xlane.f32.xlu0 %v742
    %v744 = vpop.xlane.xlu0 %743
    %v745 = vsel %vm101, %v739, -inf
    %746 = vmax.xlane.f32.xlu0 %v745
    %v747 = vpop.xlane.xlu0 %746
    %v748 = vsel %vm101, %v740, -inf
    %749 = vmax.xlane.f32.xlu0 %v748
    %v750 = vpop.xlane.xlu0 %749
    %v751 = vsel %vm101, %v741, -inf
    %752 = vmax.xlane.f32.xlu0 %v751
    %v753 = vpop.xlane.xlu0 %752
    %v754 = vsub.f32 %v738, %v744
    %v755 = vsub.f32 %v739, %v747
    %v756 = vsub.f32 %v740, %v750
    %v757 = vsub.f32 %v741, %v753
    %v758 = vmul.f32 %v754, 1.442695
    %v759 = vpow.pop %v758
    %v760 = vmul.f32 %v755, 1.442695
    %v761 = vpow.pop %v760
    %v762 = vmul.f32 %v756, 1.442695
    %v763 = vpow.pop %v762
    %v764 = vmul.f32 %v757, 1.442695
    %v765 = vpow.pop %v764
    %v766 = vsel %vm101, %v759, 0.0
    %767 = vadd.xlane.f32.xlu0 %v766
    %v768 = vpop.xlane.xlu0 %767
    %v769 = vsel %vm101, %v761, 0.0
    %770 = vadd.xlane.f32.xlu0 %v769
    %v771 = vpop.xlane.xlu0 %770
    %v772 = vsel %vm101, %v763, 0.0
    %773 = vadd.xlane.f32.xlu0 %v772
    %v774 = vpop.xlane.xlu0 %773
    %v775 = vsel %vm101, %v765, 0.0
    %776 = vadd.xlane.f32.xlu0 %v775
    %v777 = vpop.xlane.xlu0 %776
    %v778 = vrcp.pop %v768
    %v779 = vmul.f32 %v759, %v778
    %v780 = vrcp.pop %v771
    %v781 = vmul.f32 %v761, %v780
    %v782 = vrcp.pop %v774
    %v783 = vmul.f32 %v763, %v782
    %v784 = vrcp.pop %v777
    %v785 = vmul.f32 %v765, %v784
    %786 = vst.msk [vmem:[#allocation7] sm:$0xff] %vm101, %v779
    %787 = vst.msk [vmem:[#allocation7 + $0x8] sm:$0xff] %vm101, %v781
    %788 = vst.msk [vmem:[#allocation7 + $0x10] sm:$0xff] %vm101, %v783
    %789 = vst.msk [vmem:[#allocation7 + $0x18] sm:$0xff] %vm101, %v785
    // Predicated region
    $region42: #{tpu_custom_call.1} parent=1 // pred_check
      _
    $region43: #{tpu_custom_call.1} parent=1 // pred_check_branch
      %791 = sbr.rel (0) target = $region45
    $region44: #{tpu_custom_call.1} parent=1 // pred_region
      %s793 = ssub.s32 512, 512
      %794 = vsyncadd [#allocation4], %s793
      %s795 = sshll.u32 [#allocation7], 4
      %s796 = int_to_ptr.vmem [resolvable:$true] %s795
      %801 = dma.vmem_to_hbm [thread:$0]  %s796, 512, %s8, [#allocation4], 128, 128, 8
    $region45: #{tpu_custom_call.1} parent=1 // pred_fallthru
      _
    // Predicated region
    $region46: #{tpu_custom_call.1} parent=1 // pred_check
      _
    $region47: #{tpu_custom_call.1} parent=1 // pred_check_branch
      %803 = sbr.rel (0) target = $region49
    $region48: #{tpu_custom_call.1} parent=1 // pred_region
      %804 = dma.done [#allocation4], 512
    $region49: #{tpu_custom_call.1} parent=1 // pred_fallthru
      _
    %805 = vsyncpa [#allocation3], 1
    %806 = vsyncpa [#allocation4], 1
    %807 = vsyncpa [#allocation5], 1

</llo_original>
